<compile_context>
chip_gen: v6e
topology: v6e:2x2x1
jax: 0.10.0
libtpu: 0.0.40
codegen_flags: <defaults>
</compile_context>

<pallas_src>
import functools

import jax
import jax.numpy as jnp
from jax.experimental import pallas as pl
from jax.experimental.pallas import tpu as pltpu


def _gated_activation_kernel(x_ref, o_ref, *, ch):
    # x_ref: (C, TILE_S) tile. Rows [0, ch) -> tanh branch, rows [ch, 2*ch) -> gate.
    # Math in f32 (EUP on v5e has no bf16 path); store back in the output dtype.
    xv = x_ref[:ch, :].astype(jnp.float32)
    gv = x_ref[ch:, :].astype(jnp.float32)
    o_ref[...] = (jnp.tanh(xv) * jax.nn.sigmoid(gv)).astype(o_ref.dtype)


def _pick_spatial_tile(S, target=1024):
    """Largest multiple of 128 that divides S, capped at `target`; else full S."""
    if S % 128 != 0:
        # Full-extent last dim is always a legal block (equals the array dim).
        return S
    best = 128
    t = 128
    cap = min(S, target)
    while t <= cap:
        if S % t == 0:
            best = t
        t += 128
    return best


def gated_activation(x, *, spatial_tile_target=1024):
    B, C, D, H, W = x.shape
    assert C % 2 == 0, "GatedActivation requires an even channel count"
    ch = C // 2
    S = D * H * W

    tile_s = _pick_spatial_tile(S, spatial_tile_target)
    n_s = S // tile_s

    x_flat = x.reshape(B, C, S)

    dtype_bytes = jnp.dtype(x.dtype).itemsize
    cost = pl.CostEstimate(
        flops=B * ch * S,                      # elementwise product
        transcendentals=2 * B * ch * S,        # tanh + sigmoid
        bytes_accessed=3 * B * ch * S * dtype_bytes,   # read 2, write 1 per out elem
    )

    kernel = functools.partial(_gated_activation_kernel, ch=ch)

    out_flat = pl.pallas_call(
        kernel,
        out_shape=jax.ShapeDtypeStruct((B, ch, S), x.dtype),
        grid_spec=pltpu.PrefetchScalarGridSpec(
            num_scalar_prefetch=0,
            grid=(B, n_s),
            in_specs=[
                # One DMA per step: full channel extent (so sublane dim == full
                # array dim, always legal) x a lane-dense spatial tile.
                pl.BlockSpec((None, C, tile_s), lambda b, s: (b, 0, s)),
            ],
            out_specs=pl.BlockSpec((None, ch, tile_s), lambda b, s: (b, 0, s)),
        ),
        compiler_params=pltpu.CompilerParams(
            dimension_semantics=("parallel", "parallel"),
        ),
        cost_estimate=cost,
    )(x_flat)

    return out_flat.reshape(B, ch, D, H, W)


if __name__ == "__main__":
    key = jax.random.PRNGKey(0)
    # Small shapes consistent with the 5-D forward: B=2, C=16 (split -> 8), D=4, H=8, W=16.
    B, C, D, H, W = 2, 16, 4, 8, 16
    x = jax.random.normal(key, (B, C, D, H, W), dtype=jnp.float32)

    out = jax.block_until_ready(gated_activation(x))

    # Reference check (plain JAX), identical semantics to the PyTorch module.
    ref = jnp.tanh(x[:, : C // 2]) * jax.nn.sigmoid(x[:, C // 2 :])
    assert out.shape == (B, C // 2, D, H, W)
    assert jnp.allclose(out, ref, atol=1e-6, rtol=1e-6)

    print("KERNEL_OK")
</pallas_src>

<mosaic_0001>
module attributes {stable_mosaic.version = 11 : i64} {
  func.func @_gated_activation_kernel(%arg0: i32, %arg1: i32, %arg2: memref<1x16x512xf32, #tpu.memory_space<vmem>>, %arg3: memref<1x8x512xf32, #tpu.memory_space<vmem>>) attributes {dimension_semantics = [#tpu.dimension_semantics<parallel>, #tpu.dimension_semantics<parallel>], iteration_bounds = array<i64: 2, 1>, scalar_prefetch = 0 : i64, scratch_operands = 0 : i64, tpu.core_type = #tpu.core_type<tc>, window_params = [{transform_indices = @transform_0, window_bounds = array<i64: 1, 16, 512>}, {transform_indices = @transform_1, window_bounds = array<i64: 1, 8, 512>}]} {
    %c0 = arith.constant 0 : index
    %c0_0 = arith.constant 0 : index
    %c0_1 = arith.constant 0 : index
    %0 = vector.load %arg2[%c0, %c0_0, %c0_1] : memref<1x16x512xf32, #tpu.memory_space<vmem>>, vector<1x8x512xf32>
    %1 = vector.shape_cast %0 : vector<1x8x512xf32> to vector<8x512xf32>
    %c0_2 = arith.constant 0 : index
    %c8 = arith.constant 8 : index
    %c0_3 = arith.constant 0 : index
    %2 = vector.load %arg2[%c0_2, %c8, %c0_3] : memref<1x16x512xf32, #tpu.memory_space<vmem>>, vector<1x8x512xf32>
    %3 = vector.shape_cast %2 : vector<1x8x512xf32> to vector<8x512xf32>
    %4 = math.tanh %1 : vector<8x512xf32>
    %5 = arith.negf %3 : vector<8x512xf32>
    %6 = math.exp %5 : vector<8x512xf32>
    %cst = arith.constant 1.000000e+00 : f32
    %7 = vector.broadcast %cst : f32 to vector<8x512xf32>
    %8 = arith.addf %7, %6 : vector<8x512xf32>
    %9 = arith.divf %7, %8 : vector<8x512xf32>
    %10 = arith.mulf %4, %9 : vector<8x512xf32>
    %c0_4 = arith.constant 0 : index
    %c0_5 = arith.constant 0 : index
    %c0_6 = arith.constant 0 : index
    %11 = vector.load %arg3[%c0_4, %c0_5, %c0_6] : memref<1x8x512xf32, #tpu.memory_space<vmem>>, vector<1x8x512xf32>
    %12 = vector.shape_cast %11 : vector<1x8x512xf32> to vector<8x512xf32>
    %13 = vector.shape_cast %10 : vector<8x512xf32> to vector<1x8x512xf32>
    tpu.vector_store %arg3[%c0_4, %c0_5, %c0_6], %13 {strides = array<i32>} : memref<1x8x512xf32, #tpu.memory_space<vmem>>, vector<1x8x512xf32>,
    return
  }
  func.func @transform_0(%arg0: i32, %arg1: i32) -> (i32, i32, i32) {
    %c0_i32 = arith.constant 0 : i32
    %c0_i32_0 = arith.constant 0 : i32
    return %arg0, %c0_i32, %arg1 : i32, i32, i32
  }
  func.func @transform_1(%arg0: i32, %arg1: i32) -> (i32, i32, i32) {
    %c0_i32 = arith.constant 0 : i32
    %c0_i32_0 = arith.constant 0 : i32
    return %arg0, %c0_i32, %arg1 : i32, i32, i32
  }
}

</mosaic_0001>

<llo_original>
// kernel: tpu_custom_call.1
$region0: #{tpu_custom_call.1}
  #allocation0 [shape = 'u32[]', space=smem, size = 0x4, offset = 0x4, fixed_abs, tag = 'smem constant byte address 0x4 - core index']
  #allocation1 [shape = 'u32[144,128]{1,0:T(1,128)}', space=vmem, size = 0x12000, scoped, tag = 'internal scratch']
  %s0 = inlined_call_operand.hbm [shape: f32[2,16,512], index: 0, kind: input, shape index: {}]
  %s1 = inlined_call_operand.hbm [shape: f32[2,8,512], index: 1, kind: output, shape index: {}]
  %s2 = sld [smem:[#allocation0]]
  $region41: #{tpu_custom_call.1} parent=0
    _
  %s4 = ssub.s32 1, %s2
  %s5 = scalar_select 0, %s4, %s2
  $region1: #{tpu_custom_call.1} parent=0
    #allocation2 [shape = 'u8[65536]{0}', space=vmem, size = 0x10000, scoped, tag = 'input window, operand 0']
    #allocation3 [shape = 's32[2]{0}', space=sflag, size = 0x8, scoped, tag = 'scoped memory for tpu_custom_call.1']
    #allocation4 [shape = 's32[2]{0}', space=sflag, size = 0x8, scoped, tag = 'scoped memory for tpu_custom_call.1']
    #allocation5 [shape = 'u8[32768]{0}', space=vmem, size = 0x8000, scoped, tag = 'output window, operand 0']
    %6 = vsyncpa [#allocation3], 0
    %s7 = scalar_lea.sflag [#allocation3], 1
    %8 = vsyncpa %s7, 0
    %9 = vsyncpa [#allocation4], 0
    %s10 = scalar_lea.sflag [#allocation4], 1
    %11 = vsyncpa %s10, 0
    loop: start=0, step=1, limit=4
    $region2: #{tpu_custom_call.1} parent=1 // loop_pre_header
      _
    $region3: #{tpu_custom_call.1} parent=1 // loop_header
      %s13 = sphi 0, %s17
      %p14 = scmp.ge.s32.totalorder %s13, 4
      %s20 = sphi 0, %s32
      %s21 = sphi 0, %s28
      %s22 = sphi 0, %s20
      %s23 = sphi 0, %s21
      %s24 = sphi 0, %s22
      %s25 = sphi 0, %s23
      %s37 = sphi 0, %s39
      %s40 = sphi 0, %s37
      %s41 = sphi 0, %s40
      %s57 = sphi 0, %s41
      %s65 = sphi 0, %s67
      %s68 = sphi 0, %s65
      %s69 = sphi 0, %s68
      %s85 = sphi 0, %s69
    $region4: #{tpu_custom_call.1} parent=1 // loop_header_branch
      %16 = sbr.rel (%p14) target = $region8
    $region5: #{tpu_custom_call.1} parent=1 // loop_body
      %s18 = ssub.s32 %s13, 1
      %s19 = ssub.s32 %s13, 2
      %s26 = sadd.s32 1, %s21
      %p27 = scmp.ge.s32.totalorder %s26, 1
      %s28 = scalar_select %p27, 0, %s26
      %s29 = sadd.s32 1, %s20
      %s30 = scalar_select %p27, %s29, %s20
      %p31 = scmp.ge.s32.totalorder %s30, 2
      %s32 = scalar_select %p31, 0, %s30
      %s33 = ssub.s32 %s20, %s32
      %s34 = ssub.s32 %s21, %s28
      %s35 = sor.u32 %s33, %s34
      %p36 = scmp.eq.s32.totalorder %s35, 0
      %s38 = sadd.s32 %s37, 1
      %s39 = scalar_select %p36, %s37, %s38
      %p42 = pneg %p36
      %p43 = scmp.eq.s32.totalorder %s13, 1
      %p44 = por %p42, %p43
      %p45 = scmp.ne.s32.totalorder %s37, %s40
      %p46 = scmp.eq.s32.totalorder %s13, 0
      %p47 = por %p45, %p46
      %p48 = scmp.ne.s32.totalorder %s37, %s40
      %p49 = scmp.eq.s32.totalorder %s18, 1
      %p50 = por %p48, %p49
      %p51 = scmp.ne.s32.totalorder %s40, %s41
      %p52 = scmp.eq.s32.totalorder %s18, 0
      %p53 = por %p51, %p52
      %p54 = scmp.ne.s32.totalorder %s40, %s41
      %p55 = scmp.eq.s32.totalorder %s19, 1
      %p56 = por %p54, %p55
      %p58 = scmp.ne.s32.totalorder %s41, %s57
      %p59 = scmp.eq.s32.totalorder %s19, 0
      %p60 = por %p58, %p59
      %s61 = ssub.s32 %s20, %s32
      %s62 = ssub.s32 %s21, %s28
      %s63 = sor.u32 %s61, %s62
      %p64 = scmp.eq.s32.totalorder %s63, 0
      %s66 = sadd.s32 %s65, 1
      %s67 = scalar_select %p64, %s65, %s66
      %p70 = pneg %p64
      %p71 = scmp.eq.s32.totalorder %s13, 1
      %p72 = por %p70, %p71
      %p73 = scmp.ne.s32.totalorder %s65, %s68
      %p74 = scmp.eq.s32.totalorder %s13, 0
      %p75 = por %p73, %p74
      %p76 = scmp.ne.s32.totalorder %s65, %s68
      %p77 = scmp.eq.s32.totalorder %s18, 1
      %p78 = por %p76, %p77
      %p79 = scmp.ne.s32.totalorder %s68, %s69
      %p80 = scmp.eq.s32.totalorder %s18, 0
      %p81 = por %p79, %p80
      %p82 = scmp.ne.s32.totalorder %s68, %s69
      %p83 = scmp.eq.s32.totalorder %s19, 1
      %p84 = por %p82, %p83
      %p86 = scmp.ne.s32.totalorder %s69, %s85
      %p87 = scmp.eq.s32.totalorder %s19, 0
      %p88 = por %p86, %p87
      %p89 = scmp.le.s32.totalorder 1, %s13
      %p90 = scmp.lt.s32.totalorder %s13, 3
      %p91 = pnand %p89, %p90
      %p92 = pneg %p91
      // Predicated region
      $region9: #{tpu_custom_call.1} parent=5 // pred_check
        _
      $region10: #{tpu_custom_call.1} parent=5 // pred_check_branch
        %94 = sbr.rel (%p91) target = $region12
      $region11: #{tpu_custom_call.1} parent=5 // pred_region
        %s95 = ssub.s32 %s13, 1
      $region12: #{tpu_custom_call.1} parent=5 // pred_fallthru
        _
      %p96 = scmp.lt.s32.totalorder %s13, 2
      // Predicated region
      $region13: #{tpu_custom_call.1} parent=5 // pred_check
        %p97 = pneg %p96
      $region14: #{tpu_custom_call.1} parent=5 // pred_check_branch
        %99 = sbr.rel (%p97) target = $region16
      $region15: #{tpu_custom_call.1} parent=5 // pred_region
        // Predicated region
        $region17: #{tpu_custom_call.1} parent=15 // pred_check
          %p100 = pneg %p47
        $region18: #{tpu_custom_call.1} parent=15 // pred_check_branch
          %102 = sbr.rel (%p100) target = $region20
        $region19: #{tpu_custom_call.1} parent=15 // pred_region
          %s103 = sand.u32 %s37, 1
          %s104 = scalar_lea.sflag [#allocation3], %s103
          %s105 = sand.u32 %s37, 1
          %s106 = smul.addr %s105, 64
          %s107 = scalar_lea.vmem [#allocation2], %s106
          %s108 = smul.u32 4, %s21
          %s110 = ssub.s32 1024, 1024
          %111 = vsyncadd %s104, %s110
          %s112 = smul.addr %s20, 8
          %s113 = sadd.s32 %s108, %s112
          %s114 = smul.addr %s113, 128
          %s115 = scalar_lea.hbm %s0, %s114
          %s116 = sshll.u32 %s107, 4
          %s117 = int_to_ptr.vmem [resolvable:$true] %s116
          %122 = dma.hbm_to_vmem [thread:$0]  %s115, 1024, %s117, %s104, 512, 512, 32
        $region20: #{tpu_custom_call.1} parent=15 // pred_fallthru
          _
      $region16: #{tpu_custom_call.1} parent=5 // pred_fallthru
        _
      %p123 = scmp.le.s32.totalorder 1, %s13
      %p124 = scmp.lt.s32.totalorder %s13, 3
      %p125 = pnand %p123, %p124
      %p126 = pneg %p125
      // Predicated region
      $region21: #{tpu_custom_call.1} parent=5 // pred_check
        _
      $region22: #{tpu_custom_call.1} parent=5 // pred_check_branch
        %128 = sbr.rel (%p125) target = $region24
      $region23: #{tpu_custom_call.1} parent=5 // pred_region
        %s129 = ssub.s32 %s13, 1
        %s130 = sand.u32 %s40, 1
        %s131 = scalar_lea.sflag [#allocation3], %s130
        %s132 = sand.u32 %s40, 1
        %s133 = smul.addr %s132, 64
        %s134 = scalar_lea.vmem [#allocation2], %s133
        // Predicated region
        $region25: #{tpu_custom_call.1} parent=23 // pred_check
          %p135 = pneg %p53
        $region26: #{tpu_custom_call.1} parent=23 // pred_check_branch
          %137 = sbr.rel (%p135) target = $region28
        $region27: #{tpu_custom_call.1} parent=23 // pred_region
          %138 = dma.done %s131, 1024
        $region28: #{tpu_custom_call.1} parent=23 // pred_fallthru
          _
        %s139 = sand.u32 %s40, 1
        %s140 = scalar_lea.sflag [#allocation3], %s139
        %s141 = sand.u32 %s40, 1
        %s142 = smul.addr %s141, 64
        %s143 = scalar_lea.vmem [#allocation2], %s142
        %p144 = pneg %p53
        %p145 = pneg %p50
        %p146 = pneg %p81
        %p147 = pneg %p78
        %s148 = sand.u32 %s68, 1
        %s149 = scalar_lea.sflag [#allocation4], %s148
        %s150 = sand.u32 %s68, 1
        %s151 = smul.addr %s150, 32
        %s152 = scalar_lea.vmem [#allocation5], %s151
        %s153 = smul.u32 4, %s23
        %s154 = smul.u32 4, %s23
        %v155 = vld [vmem:[%s134] sm:$0xff]
        %v156 = vld [vmem:[%s134 + $0x8] sm:$0xff]
        %v157 = vld [vmem:[%s134 + $0x10] sm:$0xff]
        %v158 = vld [vmem:[%s134 + $0x18] sm:$0xff]
        %v159 = vld [vmem:[%s134 + $0x20] sm:$0xff]
        %v160 = vld [vmem:[%s134 + $0x28] sm:$0xff]
        %v161 = vld [vmem:[%s134 + $0x30] sm:$0xff]
        %v162 = vld [vmem:[%s134 + $0x38] sm:$0xff]
        %v163 = vtanh.pop %v155
        %v164 = vtanh.pop %v156
        %v165 = vtanh.pop %v157
        %v166 = vtanh.pop %v158
        %v167 = vxor.u32 %v159, 2147483648
        %v168 = vxor.u32 %v160, 2147483648
        %v169 = vxor.u32 %v161, 2147483648
        %v170 = vxor.u32 %v162, 2147483648
        %v171 = vmul.f32 %v167, 1.442695
        %v172 = vpow.pop %v171
        %v173 = vmul.f32 %v168, 1.442695
        %v174 = vpow.pop %v173
        %v175 = vmul.f32 %v169, 1.442695
        %v176 = vpow.pop %v175
        %v177 = vmul.f32 %v170, 1.442695
        %v178 = vpow.pop %v177
        %v179 = vadd.f32 %v172, 1.0
        %v180 = vadd.f32 %v174, 1.0
        %v181 = vadd.f32 %v176, 1.0
        %v182 = vadd.f32 %v178, 1.0
        %v183 = vrcp.pop %v179
        %v184 = vmul.f32 1.0, %v183
        %v185 = vrcp.pop %v180
        %v186 = vmul.f32 1.0, %v185
        %v187 = vrcp.pop %v181
        %v188 = vmul.f32 1.0, %v187
        %v189 = vrcp.pop %v182
        %v190 = vmul.f32 1.0, %v189
        %v191 = vmul.f32 %v163, %v184
        %v192 = vmul.f32 %v164, %v186
        %v193 = vmul.f32 %v165, %v188
        %v194 = vmul.f32 %v166, %v190
        %195 = vst [vmem:[%s152] sm:$0xff] %v191
        %196 = vst [vmem:[%s152 + $0x8] sm:$0xff] %v192
        %197 = vst [vmem:[%s152 + $0x10] sm:$0xff] %v193
        %198 = vst [vmem:[%s152 + $0x18] sm:$0xff] %v194
        %s199 = sand.u32 %s68, 1
        %s200 = scalar_lea.sflag [#allocation4], %s199
        %s201 = sand.u32 %s68, 1
        %s202 = smul.addr %s201, 32
        %s203 = scalar_lea.vmem [#allocation5], %s202
        // Predicated region
        $region29: #{tpu_custom_call.1} parent=23 // pred_check
          %p204 = pneg %p78
        $region30: #{tpu_custom_call.1} parent=23 // pred_check_branch
          %206 = sbr.rel (%p204) target = $region32
        $region31: #{tpu_custom_call.1} parent=23 // pred_region
          %s207 = smul.u32 4, %s23
          %s209 = ssub.s32 512, 512
          %210 = vsyncadd %s200, %s209
          %s211 = smul.addr %s22, 4
          %s212 = sadd.s32 %s207, %s211
          %s213 = smul.addr %s212, 128
          %s214 = scalar_lea.hbm %s1, %s213
          %s216 = sshll.u32 %s203, 4
          %s217 = int_to_ptr.vmem [resolvable:$true] %s216
          %219 = dma.vmem_to_hbm [thread:$0]  %s217, 512, %s214, %s200
        $region32: #{tpu_custom_call.1} parent=23 // pred_fallthru
          _
      $region24: #{tpu_custom_call.1} parent=5 // pred_fallthru
        _
      %p220 = scmp.le.s32.totalorder 2, %s13
      // Predicated region
      $region33: #{tpu_custom_call.1} parent=5 // pred_check
        %p221 = pneg %p220
      $region34: #{tpu_custom_call.1} parent=5 // pred_check_branch
        %223 = sbr.rel (%p221) target = $region36
      $region35: #{tpu_custom_call.1} parent=5 // pred_region
        %s224 = ssub.s32 %s13, 2
        // Predicated region
        $region37: #{tpu_custom_call.1} parent=35 // pred_check
          %p225 = pneg %p84
        $region38: #{tpu_custom_call.1} parent=35 // pred_check_branch
          %227 = sbr.rel (%p225) target = $region40
        $region39: #{tpu_custom_call.1} parent=35 // pred_region
          %s228 = sand.u32 %s69, 1
          %s229 = scalar_lea.sflag [#allocation4], %s228
          %s230 = sand.u32 %s69, 1
          %s231 = smul.addr %s230, 32
          %s232 = scalar_lea.vmem [#allocation5], %s231
          %233 = dma.done %s229, 512
        $region40: #{tpu_custom_call.1} parent=35 // pred_fallthru
          _
      $region36: #{tpu_custom_call.1} parent=5 // pred_fallthru
        _
    $region6: #{tpu_custom_call.1} parent=1 // loop_footer
      %s17 = sadd.s32 1, %s13
    $region7: #{tpu_custom_call.1} parent=1 // loop_footer_branch
      %12 = sbr.rel target = $region3
    $region8: #{tpu_custom_call.1} parent=1 // loop_exit
      _
    %234 = vsyncpa [#allocation3], 1
    %s235 = scalar_lea.sflag [#allocation3], 1
    %236 = vsyncpa %s235, 1
    %237 = vsyncpa [#allocation4], 1
    %s238 = scalar_lea.sflag [#allocation4], 1
    %239 = vsyncpa %s238, 1

</llo_original>
